<compile_context>
chip_gen: v5e
topology: v5e:2x2
jax: 0.10.0
libtpu: 0.0.40
codegen_flags: <defaults>
</compile_context>

<pallas_src>
import numpy as np

import jax
import jax.numpy as jnp
from jax import lax
from jax.experimental import pallas as pl
from jax.experimental.pallas import tpu as pltpu


_CLSP = 128  # lane-padded class axis for the FC / softmax


def _pack_params(w1, b1, w2, b2, wfc, bfc, H, W, n_classes, mxu_dtype):
    """Host-side repack of PyTorch-layout weights into Toeplitz matmul form."""
    C1, C2 = w1.shape[0], w2.shape[0]
    Hh, Wh = H // 2, W // 2
    L1, L2 = W * C1, Wh * C2

    # conv1: T1[dy, x+dx, x*C1 + c] = w1[c, 0, dy, dx]
    t1 = np.zeros((3, W + 2, L1), np.float32)
    for dy in range(3):
        for dx in range(3):
            for x in range(W):
                t1[dy, x + dx, x * C1:(x + 1) * C1] = w1[:, 0, dy, dx]
    b1row = np.tile(np.asarray(b1, np.float32), W)[None, :]            # (1, L1)

    # conv2 reads the *uncompacted* W-pooled row (pooled x lives at lane block
    # 2*x*C1): T2[dy, 2*(xo+dx-1)*C1 + c1, xo*C2 + c2] = w2[c2, c1, dy, dx],
    # out-of-range xo+dx-1 omitted (= horizontal zero padding).
    t2 = np.zeros((3, L1, L2), np.float32)
    for dy in range(3):
        for dx in range(3):
            for xo in range(Wh):
                xi = xo + dx - 1
                if 0 <= xi < Wh:
                    t2[dy, 2 * xi * C1:2 * xi * C1 + C1,
                       xo * C2:(xo + 1) * C2] = w2[:, :, dy, dx].T
    b2row = np.tile(np.asarray(b2, np.float32), Wh)[None, :]           # (1, L2)

    # GAP folded into the FC: wfc tiled over the xo lane-groups, pre-scaled.
    wfc_big = np.zeros((L2, _CLSP), np.float32)
    wfc_t = np.asarray(wfc, np.float32).T / float(Hh * Wh)             # (C2, ncls)
    for xo in range(Wh):
        wfc_big[xo * C2:(xo + 1) * C2, :n_classes] = wfc_t
    bfcrow = np.zeros((1, _CLSP), np.float32)
    bfcrow[0, :n_classes] = np.asarray(bfc, np.float32)

    return dict(t1=jnp.asarray(t1, mxu_dtype), b1=jnp.asarray(b1row),
                t2=jnp.asarray(t2, mxu_dtype), b2=jnp.asarray(b2row),
                wfc=jnp.asarray(wfc_big), bfc=jnp.asarray(bfcrow))


def _make_fused_forward(B, H, W, C1, C2, n_classes, mxu_dtype):
    """One pallas_call: whole forward for both images of each batch element."""
    Hh, Wh = H // 2, W // 2
    L1, L2 = W * C1, Wh * C2
    f32 = jnp.float32

    def kernel(x_ref, t1_ref, b1_ref, t2_ref, b2_ref, wfc_ref, bfc_ref,
               out_ref, h1_ref, mpad_ref):
        # ---- conv1: 3 Toeplitz matmuls over dy; lanes pack (x, c1) ----------
        acc1 = None
        for dy in range(3):
            xs = x_ref[0, :, dy:dy + H, :].reshape(2 * H, W + 2).astype(mxu_dtype)
            t = jnp.dot(xs, t1_ref[dy], preferred_element_type=f32)
            acc1 = t if acc1 is None else acc1 + t
        h1_ref[...] = jnp.maximum(acc1 + b1_ref[...], 0.0)        # (2H, L1)

        # ---- 2x2 max-pool: strided-row max (H) + lane-shift max (W) ---------
        q = jnp.maximum(h1_ref[pl.ds(0, H, 2), :],
                        h1_ref[pl.ds(1, H, 2), :])                # (2*Hh, L1)
        q_shift = jnp.concatenate([q[:, C1:], q[:, :C1]], axis=-1)
        m = jnp.maximum(q, q_shift)   # pooled value for x_p lives at lane 2*x_p*C1

        # conv2 input scratch: zero only the 2 halo rows, one contiguous interior store
        zrow = jnp.zeros((2, 1, L1), f32)
        mpad_ref[:, 0:1, :] = zrow
        mpad_ref[:, Hh + 1:Hh + 2, :] = zrow
        mpad_ref[:, 1:1 + Hh, :] = m.reshape(2, Hh, L1)

        # ---- conv2: 3 Toeplitz matmuls over dy; lanes pack (xo, c2) ---------
        acc2 = None
        for dy in range(3):
            ms = mpad_ref[:, dy:dy + Hh, :].reshape(2 * Hh, L1).astype(mxu_dtype)
            t = jnp.dot(ms, t2_ref[dy], preferred_element_type=f32)
            acc2 = t if acc2 is None else acc2 + t
        h2 = jnp.maximum(acc2 + b2_ref[...], 0.0)                 # (2*Hh, L2)

        # ---- GAP (row-sum) folded with FC into one matmul -------------------
        s1 = jnp.sum(h2.reshape(2, Hh, L2), axis=1)               # (2, L2)
        logits = jnp.dot(s1, wfc_ref[...], preferred_element_type=f32) + bfc_ref[...]

        # ---- masked softmax over the first n_classes lanes (exact division) -
        cls = lax.broadcasted_iota(jnp.int32, (2, _CLSP), 1)
        valid = cls < n_classes
        mx = jnp.max(jnp.where(valid, logits, jnp.finfo(f32).min),
                     axis=-1, keepdims=True)
        e = jnp.where(valid, jnp.exp(logits - mx), 0.0)
        probs = e / jnp.sum(e, axis=-1, keepdims=True)

        # ---- per-batch-element squared prob diff, lane-dense output tile ----
        # TODO(synk): ClassifierLoss not in provided source; MSE stand-in.
        d = probs[0:1, :] - probs[1:2, :]
        out_ref[...] = jnp.broadcast_to((d * d)[None], (1, 8, _CLSP))

    return pl.pallas_call(
        kernel,
        out_shape=jax.ShapeDtypeStruct((B, 8, _CLSP), jnp.float32),
        grid_spec=pltpu.PrefetchScalarGridSpec(
            num_scalar_prefetch=0,
            grid=(B,),
            in_specs=[
                pl.BlockSpec((1, 2, H + 2, W + 2), lambda b: (b, 0, 0, 0)),
                pl.BlockSpec((3, W + 2, L1), lambda b: (0, 0, 0)),
                pl.BlockSpec((1, L1), lambda b: (0, 0)),
                pl.BlockSpec((3, L1, L2), lambda b: (0, 0, 0)),
                pl.BlockSpec((1, L2), lambda b: (0, 0)),
                pl.BlockSpec((L2, _CLSP), lambda b: (0, 0)),
                pl.BlockSpec((1, _CLSP), lambda b: (0, 0)),
            ],
            out_specs=pl.BlockSpec((1, 8, _CLSP), lambda b: (b, 0, 0)),
            scratch_shapes=[
                pltpu.VMEM((2 * H, L1), jnp.float32),        # conv1 output
                pltpu.VMEM((2, Hh + 2, L1), jnp.float32),    # padded conv2 input
            ]),
        compiler_params=pltpu.CompilerParams(
            dimension_semantics=("parallel",)),
    )


def _build_forward(n_classes, C1, C2, mxu_dtype):
    @jax.jit
    def forward(params, original_nchw, modified_nchw):
        B, Cin, H, W = original_nchw.shape
        assert Cin == 1, "only the grayscale (size==9) path is implemented"
        assert H % 2 == 0 and W % 2 == 0
        # (B, 2, H+2, W+2): original/modified paired per batch element, W in lanes.
        x = jnp.stack([original_nchw[:, 0], modified_nchw[:, 0]], axis=1)
        x = jnp.pad(x.astype(jnp.float32), ((0, 0), (0, 0), (1, 1), (1, 1)))

        fused = _make_fused_forward(B, H, W, C1, C2, n_classes, mxu_dtype)
        sq = fused(x, params["t1"], params["b1"], params["t2"], params["b2"],
                   params["wfc"], params["bfc"])
        # per-batch squared prob diffs live (replicated) in each output tile; use row 0.
        return jnp.sum(sq[:, 0, :]) / (B * n_classes)

    return forward


class ClassifierPallas:
    """Pallas re-implementation of Classifier.forward: loss(model(x1), model(x2))."""

    C1, C2 = 8, 16  # channel widths of the stand-in CustomNetSmallGAPLogits

    def __init__(self, n_classes=4, in_channels=1, image_hw=(16, 16),
                 mxu_dtype=jnp.bfloat16, key=jax.random.PRNGKey(42)):
        assert in_channels == 1, "TODO(synk): only the size==9 grayscale path"
        H, W = image_hw
        assert H % 2 == 0 and W % 2 == 0
        k1, k2, k3, k4, k5, k6 = jax.random.split(key, 6)
        c1, c2 = self.C1, self.C2
        # Synthetic weights in PyTorch layouts (conv: [Cout,Cin,kh,kw], fc: [out,in]).
        # TODO(synk): replace with the real torch checkpoint weights when available.
        w1 = 0.3 * jax.random.normal(k1, (c1, 1, 3, 3), jnp.float32)
        b1 = 0.1 * jax.random.normal(k2, (c1,), jnp.float32)
        w2 = 0.3 * jax.random.normal(k3, (c2, c1, 3, 3), jnp.float32)
        b2 = 0.1 * jax.random.normal(k4, (c2,), jnp.float32)
        wfc = 0.3 * jax.random.normal(k5, (n_classes, c2), jnp.float32)
        bfc = 0.1 * jax.random.normal(k6, (n_classes,), jnp.float32)

        self.n_classes = n_classes
        self.image_hw = image_hw
        self.params = _pack_params(np.asarray(w1), np.asarray(b1),
                                   np.asarray(w2), np.asarray(b2),
                                   np.asarray(wfc), np.asarray(bfc),
                                   H, W, n_classes, mxu_dtype)
        self._forward = _build_forward(n_classes, self.C1, self.C2, mxu_dtype)

    def forward(self, original_image, modified_image):
        return self._forward(self.params, original_image, modified_image)


if __name__ == "__main__":
    key = jax.random.PRNGKey(0)
    k_orig, k_mod = jax.random.split(key)
    B, C, H, W = 2, 1, 16, 16                      # NCHW, PyTorch convention
    original = jax.random.normal(k_orig, (B, C, H, W), jnp.float32)
    modified = jax.random.normal(k_mod, (B, C, H, W), jnp.float32)

    clf = ClassifierPallas(n_classes=4, in_channels=C, image_hw=(H, W))
    loss = clf.forward(original, modified)
    jax.block_until_ready(loss)
    print("KERNEL_OK")
</pallas_src>

<mosaic_0001>
module attributes {stable_mosaic.version = 11 : i64} {
  func.func @kernel(%arg0: i32, %arg1: memref<1x2x18x18xf32, #tpu.memory_space<vmem>>, %arg2: memref<3x18x128xbf16, #tpu.memory_space<vmem>>, %arg3: memref<1x128xf32, #tpu.memory_space<vmem>>, %arg4: memref<3x128x128xbf16, #tpu.memory_space<vmem>>, %arg5: memref<1x128xf32, #tpu.memory_space<vmem>>, %arg6: memref<128x128xf32, #tpu.memory_space<vmem>>, %arg7: memref<1x128xf32, #tpu.memory_space<vmem>>, %arg8: memref<1x8x128xf32, #tpu.memory_space<vmem>>, %arg9: memref<32x128xf32, #tpu.memory_space<vmem>>, %arg10: memref<2x10x128xf32, #tpu.memory_space<vmem>>) attributes {dimension_semantics = [#tpu.dimension_semantics<parallel>], iteration_bounds = array<i64: 2>, scalar_prefetch = 0 : i64, scratch_operands = 2 : i64, tpu.core_type = #tpu.core_type<tc>, window_params = [{transform_indices = @transform_0, window_bounds = array<i64: 1, 2, 18, 18>}, {pipeline_mode = #tpu.pipeline_mode<synchronous>, transform_indices = @transform_1, window_bounds = array<i64: 3, 18, 128>}, {pipeline_mode = #tpu.pipeline_mode<synchronous>, transform_indices = @transform_2, window_bounds = array<i64: 1, 128>}, {pipeline_mode = #tpu.pipeline_mode<synchronous>, transform_indices = @transform_3, window_bounds = array<i64: 3, 128, 128>}, {pipeline_mode = #tpu.pipeline_mode<synchronous>, transform_indices = @transform_4, window_bounds = array<i64: 1, 128>}, {pipeline_mode = #tpu.pipeline_mode<synchronous>, transform_indices = @transform_5, window_bounds = array<i64: 128, 128>}, {pipeline_mode = #tpu.pipeline_mode<synchronous>, transform_indices = @transform_6, window_bounds = array<i64: 1, 128>}, {transform_indices = @transform_7, window_bounds = array<i64: 1, 8, 128>}]} {
    %c0 = arith.constant 0 : index
    %c0_0 = arith.constant 0 : index
    %c0_1 = arith.constant 0 : index
    %c0_2 = arith.constant 0 : index
    %0 = vector.load %arg1[%c0, %c0_0, %c0_1, %c0_2] : memref<1x2x18x18xf32, #tpu.memory_space<vmem>>, vector<1x2x16x18xf32>
    %1 = vector.shape_cast %0 : vector<1x2x16x18xf32> to vector<2x16x18xf32>
    %2 = vector.shape_cast %1 : vector<2x16x18xf32> to vector<32x18xf32>
    %3 = arith.truncf %2 : vector<32x18xf32> to vector<32x18xbf16>
    %c0_3 = arith.constant 0 : index
    %c0_4 = arith.constant 0 : index
    %c0_5 = arith.constant 0 : index
    %4 = vector.load %arg2[%c0_3, %c0_4, %c0_5] : memref<3x18x128xbf16, #tpu.memory_space<vmem>>, vector<1x18x128xbf16>
    %5 = vector.shape_cast %4 : vector<1x18x128xbf16> to vector<18x128xbf16>
    %cst = arith.constant dense<0.000000e+00> : vector<32x128xf32>
    %6 = tpu.matmul %3, %5, %cst {dimension_numbers = #tpu.dot_dimension_numbers<[1], [0], [0], [1], [0, 0, 1, 1], [], []>} : vector<32x18xbf16>, vector<18x128xbf16>, vector<32x128xf32> -> vector<32x128xf32>
    %c0_6 = arith.constant 0 : index
    %c0_7 = arith.constant 0 : index
    %c1 = arith.constant 1 : index
    %c0_8 = arith.constant 0 : index
    %7 = vector.load %arg1[%c0_6, %c0_7, %c1, %c0_8] : memref<1x2x18x18xf32, #tpu.memory_space<vmem>>, vector<1x2x16x18xf32>
    %8 = vector.shape_cast %7 : vector<1x2x16x18xf32> to vector<2x16x18xf32>
    %9 = vector.shape_cast %8 : vector<2x16x18xf32> to vector<32x18xf32>
    %10 = arith.truncf %9 : vector<32x18xf32> to vector<32x18xbf16>
    %c1_9 = arith.constant 1 : index
    %c0_10 = arith.constant 0 : index
    %c0_11 = arith.constant 0 : index
    %11 = vector.load %arg2[%c1_9, %c0_10, %c0_11] : memref<3x18x128xbf16, #tpu.memory_space<vmem>>, vector<1x18x128xbf16>
    %12 = vector.shape_cast %11 : vector<1x18x128xbf16> to vector<18x128xbf16>
    %cst_12 = arith.constant dense<0.000000e+00> : vector<32x128xf32>
    %13 = tpu.matmul %10, %12, %cst_12 {dimension_numbers = #tpu.dot_dimension_numbers<[1], [0], [0], [1], [0, 0, 1, 1], [], []>} : vector<32x18xbf16>, vector<18x128xbf16>, vector<32x128xf32> -> vector<32x128xf32>
    %14 = arith.addf %6, %13 : vector<32x128xf32>
    %c0_13 = arith.constant 0 : index
    %c0_14 = arith.constant 0 : index
    %c2 = arith.constant 2 : index
    %c0_15 = arith.constant 0 : index
    %15 = vector.load %arg1[%c0_13, %c0_14, %c2, %c0_15] : memref<1x2x18x18xf32, #tpu.memory_space<vmem>>, vector<1x2x16x18xf32>
    %16 = vector.shape_cast %15 : vector<1x2x16x18xf32> to vector<2x16x18xf32>
    %17 = vector.shape_cast %16 : vector<2x16x18xf32> to vector<32x18xf32>
    %18 = arith.truncf %17 : vector<32x18xf32> to vector<32x18xbf16>
    %c2_16 = arith.constant 2 : index
    %c0_17 = arith.constant 0 : index
    %c0_18 = arith.constant 0 : index
    %19 = vector.load %arg2[%c2_16, %c0_17, %c0_18] : memref<3x18x128xbf16, #tpu.memory_space<vmem>>, vector<1x18x128xbf16>
    %20 = vector.shape_cast %19 : vector<1x18x128xbf16> to vector<18x128xbf16>
    %cst_19 = arith.constant dense<0.000000e+00> : vector<32x128xf32>
    %21 = tpu.matmul %18, %20, %cst_19 {dimension_numbers = #tpu.dot_dimension_numbers<[1], [0], [0], [1], [0, 0, 1, 1], [], []>} : vector<32x18xbf16>, vector<18x128xbf16>, vector<32x128xf32> -> vector<32x128xf32>
    %22 = arith.addf %14, %21 : vector<32x128xf32>
    %c0_20 = arith.constant 0 : index
    %c0_21 = arith.constant 0 : index
    %23 = vector.load %arg3[%c0_20, %c0_21] : memref<1x128xf32, #tpu.memory_space<vmem>>, vector<1x128xf32>
    %24 = vector.broadcast %23 : vector<1x128xf32> to vector<32x128xf32>
    %25 = arith.addf %22, %24 : vector<32x128xf32>
    %cst_22 = arith.constant 0.000000e+00 : f32
    %26 = vector.broadcast %cst_22 : f32 to vector<32x128xf32>
    %27 = arith.maximumf %25, %26 : vector<32x128xf32>
    %c0_23 = arith.constant 0 : index
    %c0_24 = arith.constant 0 : index
    %28 = vector.load %arg9[%c0_23, %c0_24] : memref<32x128xf32, #tpu.memory_space<vmem>>, vector<32x128xf32>
    tpu.vector_store %arg9[%c0_23, %c0_24], %27 {strides = array<i32>} : memref<32x128xf32, #tpu.memory_space<vmem>>, vector<32x128xf32>,
    %c0_25 = arith.constant 0 : index
    %c0_26 = arith.constant 0 : index
    %29 = tpu.strided_load %arg9[%c0_25, %c0_26] {strides = array<i32: 2, 1>} : memref<32x128xf32, #tpu.memory_space<vmem>>, vector<16x128xf32>
    %c1_27 = arith.constant 1 : index
    %c0_28 = arith.constant 0 : index
    %30 = tpu.strided_load %arg9[%c1_27, %c0_28] {strides = array<i32: 2, 1>} : memref<32x128xf32, #tpu.memory_space<vmem>>, vector<16x128xf32>
    %31 = arith.maximumf %29, %30 : vector<16x128xf32>
    %32 = vector.extract_strided_slice %31 {offsets = [0, 8], sizes = [16, 120], strides = [1, 1]} : vector<16x128xf32> to vector<16x120xf32>
    %33 = vector.extract_strided_slice %31 {offsets = [0, 0], sizes = [16, 8], strides = [1, 1]} : vector<16x128xf32> to vector<16x8xf32>
    %34 = tpu.concatenate %32, %33 in 1 : vector<16x120xf32>, vector<16x8xf32> -> vector<16x128xf32>
    %35 = arith.maximumf %31, %34 : vector<16x128xf32>
    %cst_29 = arith.constant 0.000000e+00 : f32
    %36 = vector.broadcast %cst_29 : f32 to vector<2x1x128xf32>
    %c0_30 = arith.constant 0 : index
    %c0_31 = arith.constant 0 : index
    %c0_32 = arith.constant 0 : index
    %37 = vector.load %arg10[%c0_30, %c0_31, %c0_32] : memref<2x10x128xf32, #tpu.memory_space<vmem>>, vector<2x1x128xf32>
    tpu.vector_store %arg10[%c0_30, %c0_31, %c0_32], %36 {strides = array<i32>} : memref<2x10x128xf32, #tpu.memory_space<vmem>>, vector<2x1x128xf32>,
    %c0_33 = arith.constant 0 : index
    %c9 = arith.constant 9 : index
    %c0_34 = arith.constant 0 : index
    %38 = vector.load %arg10[%c0_33, %c9, %c0_34] : memref<2x10x128xf32, #tpu.memory_space<vmem>>, vector<2x1x128xf32>
    tpu.vector_store %arg10[%c0_33, %c9, %c0_34], %36 {strides = array<i32>} : memref<2x10x128xf32, #tpu.memory_space<vmem>>, vector<2x1x128xf32>,
    %39 = vector.shape_cast %35 : vector<16x128xf32> to vector<2x8x128xf32>
    %c0_35 = arith.constant 0 : index
    %c1_36 = arith.constant 1 : index
    %c0_37 = arith.constant 0 : index
    %40 = vector.load %arg10[%c0_35, %c1_36, %c0_37] : memref<2x10x128xf32, #tpu.memory_space<vmem>>, vector<2x8x128xf32>
    tpu.vector_store %arg10[%c0_35, %c1_36, %c0_37], %39 {strides = array<i32>} : memref<2x10x128xf32, #tpu.memory_space<vmem>>, vector<2x8x128xf32>,
    %c0_38 = arith.constant 0 : index
    %c0_39 = arith.constant 0 : index
    %c0_40 = arith.constant 0 : index
    %41 = vector.load %arg10[%c0_38, %c0_39, %c0_40] : memref<2x10x128xf32, #tpu.memory_space<vmem>>, vector<2x8x128xf32>
    %42 = vector.shape_cast %41 : vector<2x8x128xf32> to vector<16x128xf32>
    %43 = arith.truncf %42 : vector<16x128xf32> to vector<16x128xbf16>
    %c0_41 = arith.constant 0 : index
    %c0_42 = arith.constant 0 : index
    %c0_43 = arith.constant 0 : index
    %44 = vector.load %arg4[%c0_41, %c0_42, %c0_43] : memref<3x128x128xbf16, #tpu.memory_space<vmem>>, vector<1x128x128xbf16>
    %45 = vector.shape_cast %44 : vector<1x128x128xbf16> to vector<128x128xbf16>
    %cst_44 = arith.constant dense<0.000000e+00> : vector<16x128xf32>
    %46 = tpu.matmul %43, %45, %cst_44 {dimension_numbers = #tpu.dot_dimension_numbers<[1], [0], [0], [1], [0, 0, 1, 1], [], []>} : vector<16x128xbf16>, vector<128x128xbf16>, vector<16x128xf32> -> vector<16x128xf32>
    %c0_45 = arith.constant 0 : index
    %c1_46 = arith.constant 1 : index
    %c0_47 = arith.constant 0 : index
    %47 = vector.load %arg10[%c0_45, %c1_46, %c0_47] : memref<2x10x128xf32, #tpu.memory_space<vmem>>, vector<2x8x128xf32>
    %48 = vector.shape_cast %47 : vector<2x8x128xf32> to vector<16x128xf32>
    %49 = arith.truncf %48 : vector<16x128xf32> to vector<16x128xbf16>
    %c1_48 = arith.constant 1 : index
    %c0_49 = arith.constant 0 : index
    %c0_50 = arith.constant 0 : index
    %50 = vector.load %arg4[%c1_48, %c0_49, %c0_50] : memref<3x128x128xbf16, #tpu.memory_space<vmem>>, vector<1x128x128xbf16>
    %51 = vector.shape_cast %50 : vector<1x128x128xbf16> to vector<128x128xbf16>
    %cst_51 = arith.constant dense<0.000000e+00> : vector<16x128xf32>
    %52 = tpu.matmul %49, %51, %cst_51 {dimension_numbers = #tpu.dot_dimension_numbers<[1], [0], [0], [1], [0, 0, 1, 1], [], []>} : vector<16x128xbf16>, vector<128x128xbf16>, vector<16x128xf32> -> vector<16x128xf32>
    %53 = arith.addf %46, %52 : vector<16x128xf32>
    %c0_52 = arith.constant 0 : index
    %c2_53 = arith.constant 2 : index
    %c0_54 = arith.constant 0 : index
    %54 = vector.load %arg10[%c0_52, %c2_53, %c0_54] : memref<2x10x128xf32, #tpu.memory_space<vmem>>, vector<2x8x128xf32>
    %55 = vector.shape_cast %54 : vector<2x8x128xf32> to vector<16x128xf32>
    %56 = arith.truncf %55 : vector<16x128xf32> to vector<16x128xbf16>
    %c2_55 = arith.constant 2 : index
    %c0_56 = arith.constant 0 : index
    %c0_57 = arith.constant 0 : index
    %57 = vector.load %arg4[%c2_55, %c0_56, %c0_57] : memref<3x128x128xbf16, #tpu.memory_space<vmem>>, vector<1x128x128xbf16>
    %58 = vector.shape_cast %57 : vector<1x128x128xbf16> to vector<128x128xbf16>
    %cst_58 = arith.constant dense<0.000000e+00> : vector<16x128xf32>
    %59 = tpu.matmul %56, %58, %cst_58 {dimension_numbers = #tpu.dot_dimension_numbers<[1], [0], [0], [1], [0, 0, 1, 1], [], []>} : vector<16x128xbf16>, vector<128x128xbf16>, vector<16x128xf32> -> vector<16x128xf32>
    %60 = arith.addf %53, %59 : vector<16x128xf32>
    %c0_59 = arith.constant 0 : index
    %c0_60 = arith.constant 0 : index
    %61 = vector.load %arg5[%c0_59, %c0_60] : memref<1x128xf32, #tpu.memory_space<vmem>>, vector<1x128xf32>
    %62 = vector.broadcast %61 : vector<1x128xf32> to vector<16x128xf32>
    %63 = arith.addf %60, %62 : vector<16x128xf32>
    %cst_61 = arith.constant 0.000000e+00 : f32
    %64 = vector.broadcast %cst_61 : f32 to vector<16x128xf32>
    %65 = arith.maximumf %63, %64 : vector<16x128xf32>
    %66 = vector.shape_cast %65 : vector<16x128xf32> to vector<2x8x128xf32>
    %cst_62 = arith.constant dense<0.000000e+00> : vector<2x128xf32>
    %67 = vector.multi_reduction <add>, %66, %cst_62 [1] : vector<2x8x128xf32> to vector<2x128xf32>
    %c0_63 = arith.constant 0 : index
    %c0_64 = arith.constant 0 : index
    %68 = vector.load %arg6[%c0_63, %c0_64] : memref<128x128xf32, #tpu.memory_space<vmem>>, vector<128x128xf32>
    %cst_65 = arith.constant dense<0.000000e+00> : vector<2x128xf32>
    %69 = tpu.matmul %67, %68, %cst_65 {dimension_numbers = #tpu.dot_dimension_numbers<[1], [0], [0], [1], [0, 0, 1, 1], [], []>} : vector<2x128xf32>, vector<128x128xf32>, vector<2x128xf32> -> vector<2x128xf32>
    %c0_66 = arith.constant 0 : index
    %c0_67 = arith.constant 0 : index
    %70 = vector.load %arg7[%c0_66, %c0_67] : memref<1x128xf32, #tpu.memory_space<vmem>>, vector<1x128xf32>
    %71 = vector.broadcast %70 : vector<1x128xf32> to vector<2x128xf32>
    %72 = arith.addf %69, %71 : vector<2x128xf32>
    %73 = tpu.iota {dimensions = array<i32: 1>} : vector<2x128xi32>
    %c4_i32 = arith.constant 4 : i32
    %74 = vector.broadcast %c4_i32 : i32 to vector<2x128xi32>
    %75 = arith.cmpi slt, %73, %74 : vector<2x128xi32>
    %cst_68 = arith.constant -3.40282347E+38 : f32
    %76 = vector.broadcast %cst_68 : f32 to vector<2x128xf32>
    %77 = arith.select %75, %72, %76 : vector<2x128xi1>, vector<2x128xf32>
    %cst_69 = arith.constant dense<0xFF800000> : vector<2xf32>
    %78 = vector.multi_reduction <maximumf>, %77, %cst_69 [1] : vector<2x128xf32> to vector<2xf32>
    %79 = vector.shape_cast %78 : vector<2xf32> to vector<2x1xf32>
    %80 = vector.broadcast %79 : vector<2x1xf32> to vector<2x128xf32>
    %81 = arith.subf %72, %80 : vector<2x128xf32>
    %82 = math.exp %81 : vector<2x128xf32>
    %cst_70 = arith.constant 0.000000e+00 : f32
    %83 = vector.broadcast %cst_70 : f32 to vector<2x128xf32>
    %84 = arith.select %75, %82, %83 : vector<2x128xi1>, vector<2x128xf32>
    %cst_71 = arith.constant dense<0.000000e+00> : vector<2xf32>
    %85 = vector.multi_reduction <add>, %84, %cst_71 [1] : vector<2x128xf32> to vector<2xf32>
    %86 = vector.shape_cast %85 : vector<2xf32> to vector<2x1xf32>
    %87 = vector.broadcast %86 : vector<2x1xf32> to vector<2x128xf32>
    %88 = arith.divf %84, %87 : vector<2x128xf32>
    %89 = vector.extract_strided_slice %88 {offsets = [0, 0], sizes = [1, 128], strides = [1, 1]} : vector<2x128xf32> to vector<1x128xf32>
    %90 = vector.extract_strided_slice %88 {offsets = [1, 0], sizes = [1, 128], strides = [1, 1]} : vector<2x128xf32> to vector<1x128xf32>
    %91 = arith.subf %89, %90 : vector<1x128xf32>
    %92 = arith.mulf %91, %91 : vector<1x128xf32>
    %93 = vector.shape_cast %92 : vector<1x128xf32> to vector<1x1x128xf32>
    %94 = vector.shape_cast %93 : vector<1x1x128xf32> to vector<1x1x128xf32>
    %95 = vector.broadcast %94 : vector<1x1x128xf32> to vector<1x8x128xf32>
    %c0_72 = arith.constant 0 : index
    %c0_73 = arith.constant 0 : index
    %c0_74 = arith.constant 0 : index
    %96 = vector.load %arg8[%c0_72, %c0_73, %c0_74] : memref<1x8x128xf32, #tpu.memory_space<vmem>>, vector<1x8x128xf32>
    tpu.vector_store %arg8[%c0_72, %c0_73, %c0_74], %95 {strides = array<i32>} : memref<1x8x128xf32, #tpu.memory_space<vmem>>, vector<1x8x128xf32>,
    return
  }
  func.func @transform_0(%arg0: i32) -> (i32, i32, i32, i32) {
    %c0_i32 = arith.constant 0 : i32
    %c0_i32_0 = arith.constant 0 : i32
    %c0_i32_1 = arith.constant 0 : i32
    %c0_i32_2 = arith.constant 0 : i32
    return %arg0, %c0_i32, %c0_i32_0, %c0_i32_1 : i32, i32, i32, i32
  }
  func.func @transform_1(%arg0: i32) -> (i32, i32, i32) {
    %c0_i32 = arith.constant 0 : i32
    %c0_i32_0 = arith.constant 0 : i32
    %c0_i32_1 = arith.constant 0 : i32
    %c0_i32_2 = arith.constant 0 : i32
    return %c0_i32, %c0_i32_0, %c0_i32_1 : i32, i32, i32
  }
  func.func @transform_2(%arg0: i32) -> (i32, i32) {
    %c0_i32 = arith.constant 0 : i32
    %c0_i32_0 = arith.constant 0 : i32
    %c0_i32_1 = arith.constant 0 : i32
    return %c0_i32, %c0_i32_0 : i32, i32
  }
  func.func @transform_3(%arg0: i32) -> (i32, i32, i32) {
    %c0_i32 = arith.constant 0 : i32
    %c0_i32_0 = arith.constant 0 : i32
    %c0_i32_1 = arith.constant 0 : i32
    %c0_i32_2 = arith.constant 0 : i32
    return %c0_i32, %c0_i32_0, %c0_i32_1 : i32, i32, i32
  }
  func.func @transform_4(%arg0: i32) -> (i32, i32) {
    %c0_i32 = arith.constant 0 : i32
    %c0_i32_0 = arith.constant 0 : i32
    %c0_i32_1 = arith.constant 0 : i32
    return %c0_i32, %c0_i32_0 : i32, i32
  }
  func.func @transform_5(%arg0: i32) -> (i32, i32) {
    %c0_i32 = arith.constant 0 : i32
    %c0_i32_0 = arith.constant 0 : i32
    %c0_i32_1 = arith.constant 0 : i32
    return %c0_i32, %c0_i32_0 : i32, i32
  }
  func.func @transform_6(%arg0: i32) -> (i32, i32) {
    %c0_i32 = arith.constant 0 : i32
    %c0_i32_0 = arith.constant 0 : i32
    %c0_i32_1 = arith.constant 0 : i32
    return %c0_i32, %c0_i32_0 : i32, i32
  }
  func.func @transform_7(%arg0: i32) -> (i32, i32, i32) {
    %c0_i32 = arith.constant 0 : i32
    %c0_i32_0 = arith.constant 0 : i32
    %c0_i32_1 = arith.constant 0 : i32
    return %arg0, %c0_i32, %c0_i32_0 : i32, i32, i32
  }
}

</mosaic_0001>

<llo_original>
// kernel: forward.1
$region0: #{forward.1}
  #allocation0 [shape = 'u32[]', space=smem, size = 0x4, offset = 0x4, fixed_abs, tag = 'smem constant byte address 0x4 - core index']
  #allocation1 [shape = 'u32[72,128]{1,0:T(1,128)}', space=vmem, size = 0x9000, scoped, tag = 'internal scratch']
  #allocation2 [shape = 'f32[32,128]{1,0:T(8,128)}', space=vmem, size = 0x4000, scoped, tag = 'scratch operand']
  #allocation3 [shape = 'f32[2,10,128]{2,1,0:T(8,128)}', space=vmem, size = 0x4000, scoped, tag = 'scratch operand']
  %s0 = inlined_call_operand.vmem [shape: f32[2,2,18,18], index: 0, kind: input, shape index: {}]
  %s1 = inlined_call_operand.vmem [shape: bf16[3,18,128], index: 1, kind: input, shape index: {}]
  %s2 = inlined_call_operand.hbm [shape: f32[1,128], index: 2, kind: input, shape index: {}]
  %s3 = inlined_call_operand.hbm [shape: bf16[3,128,128], index: 3, kind: input, shape index: {}]
  %s4 = inlined_call_operand.hbm [shape: f32[1,128], index: 4, kind: input, shape index: {}]
  %s5 = inlined_call_operand.vmem [shape: f32[128,128], index: 5, kind: input, shape index: {}]
  %s6 = inlined_call_operand.hbm [shape: f32[1,128], index: 6, kind: input, shape index: {}]
  %s7 = inlined_call_operand.vmem [shape: f32[2,8,128], index: 7, kind: output, shape index: {}]
  %s8 = sld [smem:[#allocation0]]
  $region77: #{forward.1} parent=0
    _
  %s10 = ssub.s32 1, %s8
  %s11 = scalar_select 0, %s10, %s8
  $region1: #{forward.1} parent=0
    #allocation4 [shape = 'u8[512]{0}', space=vmem, size = 0x400, scoped, tag = 'input window, operand 2, single buffered']
    #allocation5 [shape = 's32[2]{0}', space=sflag, size = 0x8, scoped, tag = 'scoped memory for forward.1']
    #allocation6 [shape = 'u8[98304]{0}', space=vmem, size = 0x18000, scoped, tag = 'input window, operand 3, single buffered']
    #allocation7 [shape = 's32[1]{0}', space=sflag, size = 0x4, scoped, tag = 'scoped memory for forward.1']
    #allocation8 [shape = 'u8[512]{0}', space=vmem, size = 0x400, scoped, tag = 'input window, operand 4, single buffered']
    #allocation9 [shape = 'u8[512]{0}', space=vmem, size = 0x400, scoped, tag = 'input window, operand 6, single buffered']
    #allocation10 [shape = 's32[1]{0}', space=sflag, size = 0x4, scoped, tag = 'scoped memory for forward.1']
    %12 = vsyncpa [#allocation5], 0
    %13 = vsyncpa [#allocation7], 0
    %14 = vsyncpa [#allocation10], 0
    loop: start=0, step=1, limit=4
    $region2: #{forward.1} parent=1 // loop_pre_header
      _
    $region3: #{forward.1} parent=1 // loop_header
      %s16 = sphi 0, %s20
      %p17 = scmp.ge.s32.totalorder %s16, 4
      %s26 = sphi 0, %s28
      %s29 = sphi 0, %s26
      %s30 = sphi 0, %s29
      %s46 = sphi 0, %s30
      %s50 = sphi 0, %s50
      %s52 = sphi 0, %s50
      %s53 = sphi 0, %s52
      %s67 = sphi 0, %s53
      %s71 = sphi 0, %s71
      %s73 = sphi 0, %s71
      %s74 = sphi 0, %s73
      %s88 = sphi 0, %s74
      %s92 = sphi 0, %s92
      %s94 = sphi 0, %s92
      %s95 = sphi 0, %s94
      %s109 = sphi 0, %s95
      %s113 = sphi 0, %s113
      %s115 = sphi 0, %s113
      %s116 = sphi 0, %s115
      %s130 = sphi 0, %s116
      %s134 = sphi 0, %s134
      %s136 = sphi 0, %s134
      %s137 = sphi 0, %s136
      %s151 = sphi 0, %s137
      %s155 = sphi 0, %s155
      %s157 = sphi 0, %s155
      %s158 = sphi 0, %s157
      %s172 = sphi 0, %s158
      %s178 = sphi 0, %s180
      %s181 = sphi 0, %s178
      %s182 = sphi 0, %s181
      %s198 = sphi 0, %s182
    $region4: #{forward.1} parent=1 // loop_header_branch
      %19 = sbr.rel (%p17) target = $region8
    $region5: #{forward.1} parent=1 // loop_body
      %s21 = ssub.s32 %s16, 1
      %s22 = ssub.s32 %s16, 2
      %s23 = sadd.s32 %s16, 1
      %s24 = ssub.s32 %s16, %s23
      %p25 = scmp.eq.s32.totalorder %s24, 0
      %s27 = sadd.s32 %s26, 1
      %s28 = scalar_select %p25, %s26, %s27
      %p31 = pneg %p25
      %p32 = scmp.eq.s32.totalorder %s16, 1
      %p33 = por %p31, %p32
      %p34 = scmp.ne.s32.totalorder %s26, %s29
      %p35 = scmp.eq.s32.totalorder %s16, 0
      %p36 = por %p34, %p35
      %p37 = scmp.ne.s32.totalorder %s26, %s29
      %p38 = scmp.eq.s32.totalorder %s21, 1
      %p39 = por %p37, %p38
      %p40 = scmp.ne.s32.totalorder %s29, %s30
      %p41 = scmp.eq.s32.totalorder %s21, 0
      %p42 = por %p40, %p41
      %p43 = scmp.ne.s32.totalorder %s29, %s30
      %p44 = scmp.eq.s32.totalorder %s22, 1
      %p45 = por %p43, %p44
      %p47 = scmp.ne.s32.totalorder %s30, %s46
      %p48 = scmp.eq.s32.totalorder %s22, 0
      %p49 = por %p47, %p48
      %s51 = sadd.s32 %s50, 1
      %p54 = scmp.eq.s32.totalorder %s16, 1
      %p55 = scmp.ne.s32.totalorder %s50, %s52
      %p56 = scmp.eq.s32.totalorder %s16, 0
      %p57 = por %p55, %p56
      %p58 = scmp.ne.s32.totalorder %s50, %s52
      %p59 = scmp.eq.s32.totalorder %s21, 1
      %p60 = por %p58, %p59
      %p61 = scmp.ne.s32.totalorder %s52, %s53
      %p62 = scmp.eq.s32.totalorder %s21, 0
      %p63 = por %p61, %p62
      %p64 = scmp.ne.s32.totalorder %s52, %s53
      %p65 = scmp.eq.s32.totalorder %s22, 1
      %p66 = por %p64, %p65
      %p68 = scmp.ne.s32.totalorder %s53, %s67
      %p69 = scmp.eq.s32.totalorder %s22, 0
      %p70 = por %p68, %p69
      %s72 = sadd.s32 %s71, 1
      %p75 = scmp.eq.s32.totalorder %s16, 1
      %p76 = scmp.ne.s32.totalorder %s71, %s73
      %p77 = scmp.eq.s32.totalorder %s16, 0
      %p78 = por %p76, %p77
      %p79 = scmp.ne.s32.totalorder %s71, %s73
      %p80 = scmp.eq.s32.totalorder %s21, 1
      %p81 = por %p79, %p80
      %p82 = scmp.ne.s32.totalorder %s73, %s74
      %p83 = scmp.eq.s32.totalorder %s21, 0
      %p84 = por %p82, %p83
      %p85 = scmp.ne.s32.totalorder %s73, %s74
      %p86 = scmp.eq.s32.totalorder %s22, 1
      %p87 = por %p85, %p86
      %p89 = scmp.ne.s32.totalorder %s74, %s88
      %p90 = scmp.eq.s32.totalorder %s22, 0
      %p91 = por %p89, %p90
      %s93 = sadd.s32 %s92, 1
      %p96 = scmp.eq.s32.totalorder %s16, 1
      %p97 = scmp.ne.s32.totalorder %s92, %s94
      %p98 = scmp.eq.s32.totalorder %s16, 0
      %p99 = por %p97, %p98
      %p100 = scmp.ne.s32.totalorder %s92, %s94
      %p101 = scmp.eq.s32.totalorder %s21, 1
      %p102 = por %p100, %p101
      %p103 = scmp.ne.s32.totalorder %s94, %s95
      %p104 = scmp.eq.s32.totalorder %s21, 0
      %p105 = por %p103, %p104
      %p106 = scmp.ne.s32.totalorder %s94, %s95
      %p107 = scmp.eq.s32.totalorder %s22, 1
      %p108 = por %p106, %p107
      %p110 = scmp.ne.s32.totalorder %s95, %s109
      %p111 = scmp.eq.s32.totalorder %s22, 0
      %p112 = por %p110, %p111
      %s114 = sadd.s32 %s113, 1
      %p117 = scmp.eq.s32.totalorder %s16, 1
      %p118 = scmp.ne.s32.totalorder %s113, %s115
      %p119 = scmp.eq.s32.totalorder %s16, 0
      %p120 = por %p118, %p119
      %p121 = scmp.ne.s32.totalorder %s113, %s115
      %p122 = scmp.eq.s32.totalorder %s21, 1
      %p123 = por %p121, %p122
      %p124 = scmp.ne.s32.totalorder %s115, %s116
      %p125 = scmp.eq.s32.totalorder %s21, 0
      %p126 = por %p124, %p125
      %p127 = scmp.ne.s32.totalorder %s115, %s116
      %p128 = scmp.eq.s32.totalorder %s22, 1
      %p129 = por %p127, %p128
      %p131 = scmp.ne.s32.totalorder %s116, %s130
      %p132 = scmp.eq.s32.totalorder %s22, 0
      %p133 = por %p131, %p132
      %s135 = sadd.s32 %s134, 1
      %p138 = scmp.eq.s32.totalorder %s16, 1
      %p139 = scmp.ne.s32.totalorder %s134, %s136
      %p140 = scmp.eq.s32.totalorder %s16, 0
      %p141 = por %p139, %p140
      %p142 = scmp.ne.s32.totalorder %s134, %s136
      %p143 = scmp.eq.s32.totalorder %s21, 1
      %p144 = por %p142, %p143
      %p145 = scmp.ne.s32.totalorder %s136, %s137
      %p146 = scmp.eq.s32.totalorder %s21, 0
      %p147 = por %p145, %p146
      %p148 = scmp.ne.s32.totalorder %s136, %s137
      %p149 = scmp.eq.s32.totalorder %s22, 1
      %p150 = por %p148, %p149
      %p152 = scmp.ne.s32.totalorder %s137, %s151
      %p153 = scmp.eq.s32.totalorder %s22, 0
      %p154 = por %p152, %p153
      %s156 = sadd.s32 %s155, 1
      %p159 = scmp.eq.s32.totalorder %s16, 1
      %p160 = scmp.ne.s32.totalorder %s155, %s157
      %p161 = scmp.eq.s32.totalorder %s16, 0
      %p162 = por %p160, %p161
      %p163 = scmp.ne.s32.totalorder %s155, %s157
      %p164 = scmp.eq.s32.totalorder %s21, 1
      %p165 = por %p163, %p164
      %p166 = scmp.ne.s32.totalorder %s157, %s158
      %p167 = scmp.eq.s32.totalorder %s21, 0
      %p168 = por %p166, %p167
      %p169 = scmp.ne.s32.totalorder %s157, %s158
      %p170 = scmp.eq.s32.totalorder %s22, 1
      %p171 = por %p169, %p170
      %p173 = scmp.ne.s32.totalorder %s158, %s172
      %p174 = scmp.eq.s32.totalorder %s22, 0
      %p175 = por %p173, %p174
      %s176 = ssub.s32 %s16, %s23
      %p177 = scmp.eq.s32.totalorder %s176, 0
      %s179 = sadd.s32 %s178, 1
      %s180 = scalar_select %p177, %s178, %s179
      %p183 = pneg %p177
      %p184 = scmp.eq.s32.totalorder %s16, 1
      %p185 = por %p183, %p184
      %p186 = scmp.ne.s32.totalorder %s178, %s181
      %p187 = scmp.eq.s32.totalorder %s16, 0
      %p188 = por %p186, %p187
      %p189 = scmp.ne.s32.totalorder %s178, %s181
      %p190 = scmp.eq.s32.totalorder %s21, 1
      %p191 = por %p189, %p190
      %p192 = scmp.ne.s32.totalorder %s181, %s182
      %p193 = scmp.eq.s32.totalorder %s21, 0
      %p194 = por %p192, %p193
      %p195 = scmp.ne.s32.totalorder %s181, %s182
      %p196 = scmp.eq.s32.totalorder %s22, 1
      %p197 = por %p195, %p196
      %p199 = scmp.ne.s32.totalorder %s182, %s198
      %p200 = scmp.eq.s32.totalorder %s22, 0
      %p201 = por %p199, %p200
      %p202 = scmp.le.s32.totalorder 1, %s16
      %p203 = scmp.lt.s32.totalorder %s16, 3
      %p204 = pnand %p202, %p203
      %p205 = pneg %p204
      // Predicated region
      $region9: #{forward.1} parent=5 // pred_check
        _
      $region10: #{forward.1} parent=5 // pred_check_branch
        %207 = sbr.rel (%p204) target = $region12
      $region11: #{forward.1} parent=5 // pred_region
        %s208 = ssub.s32 %s16, 1
        // Predicated region
        $region13: #{forward.1} parent=11 // pred_check
          %p209 = pneg %p63
        $region14: #{forward.1} parent=11 // pred_check_branch
          %211 = sbr.rel (%p209) target = $region16
        $region15: #{forward.1} parent=11 // pred_region
          _
        $region16: #{forward.1} parent=11 // pred_fallthru
          _
        // Predicated region
        $region17: #{forward.1} parent=11 // pred_check
          %p212 = pneg %p84
        $region18: #{forward.1} parent=11 // pred_check_branch
          %214 = sbr.rel (%p212) target = $region20
        $region19: #{forward.1} parent=11 // pred_region
          %216 = vsyncadd [#allocation5], 0
          %s218 = sshll.u32 %s2, 4
          %s219 = int_to_ptr.hbm [resolvable:$true] %s218
          %s220 = sshll.u32 [#allocation4], 4
          %s221 = int_to_ptr.vmem [resolvable:$true] %s220
          %223 = dma.hbm_to_vmem [thread:$0]  %s219, 16, %s221, [#allocation5]
        $region20: #{forward.1} parent=11 // pred_fallthru
          _
        // Predicated region
        $region21: #{forward.1} parent=11 // pred_check
          %p224 = pneg %p105
        $region22: #{forward.1} parent=11 // pred_check_branch
          %226 = sbr.rel (%p224) target = $region24
        $region23: #{forward.1} parent=11 // pred_region
          %228 = vsyncadd [#allocation7], 0
          %s229 = sshll.u32 %s3, 4
          %s230 = int_to_ptr.hbm [resolvable:$true] %s229
          %s231 = sshll.u32 [#allocation6], 4
          %s232 = int_to_ptr.vmem [resolvable:$true] %s231
          %237 = dma.hbm_to_vmem [thread:$0]  %s230, 3072, %s232, [#allocation7], 64, 64, 4
        $region24: #{forward.1} parent=11 // pred_fallthru
          _
        // Predicated region
        $region25: #{forward.1} parent=11 // pred_check
          %p238 = pneg %p126
        $region26: #{forward.1} parent=11 // pred_check_branch
          %240 = sbr.rel (%p238) target = $region28
        $region27: #{forward.1} parent=11 // pred_region
          %242 = vsyncadd [#allocation7], 0
          %s244 = sshll.u32 %s4, 4
          %s245 = int_to_ptr.hbm [resolvable:$true] %s244
          %s246 = sshll.u32 [#allocation8], 4
          %s247 = int_to_ptr.vmem [resolvable:$true] %s246
          %249 = dma.hbm_to_vmem [thread:$0]  %s245, 16, %s247, [#allocation7]
        $region28: #{forward.1} parent=11 // pred_fallthru
          _
        // Predicated region
        $region29: #{forward.1} parent=11 // pred_check
          %p250 = pneg %p147
        $region30: #{forward.1} parent=11 // pred_check_branch
          %252 = sbr.rel (%p250) target = $region32
        $region31: #{forward.1} parent=11 // pred_region
          _
        $region32: #{forward.1} parent=11 // pred_fallthru
          _
        // Predicated region
        $region33: #{forward.1} parent=11 // pred_check
          %p253 = pneg %p168
        $region34: #{forward.1} parent=11 // pred_check_branch
          %255 = sbr.rel (%p253) target = $region36
        $region35: #{forward.1} parent=11 // pred_region
          %257 = vsyncadd [#allocation10], 0
          %s259 = sshll.u32 %s6, 4
          %s260 = int_to_ptr.hbm [resolvable:$true] %s259
          %s261 = sshll.u32 [#allocation9], 4
          %s262 = int_to_ptr.vmem [resolvable:$true] %s261
          %264 = dma.hbm_to_vmem [thread:$0]  %s260, 16, %s262, [#allocation10]
        $region36: #{forward.1} parent=11 // pred_fallthru
          _
      $region12: #{forward.1} parent=5 // pred_fallthru
        _
      %p265 = scmp.lt.s32.totalorder %s16, 2
      // Predicated region
      $region37: #{forward.1} parent=5 // pred_check
        %p266 = pneg %p265
      $region38: #{forward.1} parent=5 // pred_check_branch
        %268 = sbr.rel (%p266) target = $region40
      $region39: #{forward.1} parent=5 // pred_region
        // Predicated region
        $region41: #{forward.1} parent=39 // pred_check
          %p269 = pneg %p36
        $region42: #{forward.1} parent=39 // pred_check_branch
          %271 = sbr.rel (%p269) target = $region44
        $region43: #{forward.1} parent=39 // pred_region
          %p272 = scmp.lt.s32.totalorder %s16, 1
          %s273 = scalar_select %p272, %s16, 1
          %s274 = smul.addr %s273, 6
          %s275 = smul.addr %s274, 8
          %s276 = scalar_lea.vmem %s0, %s275
        $region44: #{forward.1} parent=39 // pred_fallthru
          _
      $region40: #{forward.1} parent=5 // pred_fallthru
        _
      %p277 = scmp.le.s32.totalorder 1, %s16
      %p278 = scmp.lt.s32.totalorder %s16, 3
      %p279 = pnand %p277, %p278
      %p280 = pneg %p279
      // Predicated region
      $region45: #{forward.1} parent=5 // pred_check
        _
      $region46: #{forward.1} parent=5 // pred_check_branch
        %282 = sbr.rel (%p279) target = $region48
      $region47: #{forward.1} parent=5 // pred_region
        %s283 = ssub.s32 %s16, 1
        // Predicated region
        $region49: #{forward.1} parent=47 // pred_check
          %p284 = pneg %p84
        $region50: #{forward.1} parent=47 // pred_check_branch
          %286 = sbr.rel (%p284) target = $region52
        $region51: #{forward.1} parent=47 // pred_region
          %288 = dma.done [#allocation5], 16
        $region52: #{forward.1} parent=47 // pred_fallthru
          _
        // Predicated region
        $region53: #{forward.1} parent=47 // pred_check
          %p289 = pneg %p105
        $region54: #{forward.1} parent=47 // pred_check_branch
          %291 = sbr.rel (%p289) target = $region56
        $region55: #{forward.1} parent=47 // pred_region
          %293 = dma.done [#allocation7], 3072
        $region56: #{forward.1} parent=47 // pred_fallthru
          _
        // Predicated region
        $region57: #{forward.1} parent=47 // pred_check
          %p294 = pneg %p126
        $region58: #{forward.1} parent=47 // pred_check_branch
          %296 = sbr.rel (%p294) target = $region60
        $region59: #{forward.1} parent=47 // pred_region
          %298 = dma.done [#allocation7], 16
        $region60: #{forward.1} parent=47 // pred_fallthru
          _
        // Predicated region
        $region61: #{forward.1} parent=47 // pred_check
          %p299 = pneg %p168
        $region62: #{forward.1} parent=47 // pred_check_branch
          %301 = sbr.rel (%p299) target = $region64
        $region63: #{forward.1} parent=47 // pred_region
          %303 = dma.done [#allocation10], 16
        $region64: #{forward.1} parent=47 // pred_fallthru
          _
        %p304 = scmp.lt.s32.totalorder %s21, 1
        %s305 = scalar_select %p304, %s21, 1
        %s306 = smul.addr %s305, 6
        %s307 = smul.addr %s306, 8
        %s308 = scalar_lea.vmem %s0, %s307
        %p309 = pneg %p42
        %p310 = pneg %p39
        %p311 = pneg %p63
        %p312 = pneg %p60
        %p313 = pneg %p84
        %p314 = pneg %p81
        %p315 = pneg %p105
        %p316 = pneg %p102
        %p317 = pneg %p126
        %p318 = pneg %p123
        %p319 = pneg %p147
        %p320 = pneg %p144
        %p321 = pneg %p168
        %p322 = pneg %p165
        %p323 = pneg %p194
        %p324 = pneg %p191
        %p325 = scmp.lt.s32.totalorder %s21, 1
        %s326 = scalar_select %p325, %s21, 1
        %s327 = smul.addr %s326, 8
        %s328 = scalar_lea.vmem %s7, %s327
        %p329 = scmp.lt.s32.totalorder %s21, 1
        %s330 = scalar_select %p329, %s21, 1
        %s331 = smul.addr %s330, 6
        %s332 = smul.addr %s331, 8
        %s333 = scalar_lea.vmem %s0, %s332
        %p334 = scmp.lt.s32.totalorder %s21, 1
        %s335 = scalar_select %p334, %s21, 1
        %s336 = smul.addr %s335, 8
        %s337 = scalar_lea.vmem %s7, %s336
        %v339 = vld [vmem:[%s333] sm:$0xff]
        %v340 = vld [vmem:[%s333 + $0x8] sm:$0xff]
        %v341 = vld [vmem:[%s333 + $0x18] sm:$0xff]
        %v342 = vld [vmem:[%s333 + $0x20] sm:$0xff]
        %v343 = vpack.c.bf16 %v340, %v339
        %v344 = vpack.c.bf16 %v342, %v341
        %v345 = vld [vmem:[%s1] sm:$0xf]
        %v346 = vld [vmem:[%s1 + $0x4] sm:$0xf]
        %v347 = vld [vmem:[%s1 + $0x8] sm:$0x1]
        %v348 = vld [vmem:[%s333 + $0x1] sm:$0xff]
        %v349 = vld [vmem:[%s333 + $0x9] sm:$0xff]
        %v350 = vld [vmem:[%s333 + $0x19] sm:$0xff]
        %v351 = vld [vmem:[%s333 + $0x21] sm:$0xff]
        %v352 = vpack.c.bf16 %v349, %v348
        %v353 = vpack.c.bf16 %v351, %v350
        %s354 = scalar_lea.vmem %s1, 12
        %v355 = vld [vmem:[%s354] sm:$0xf]
        %v356 = vld [vmem:[%s354 + $0x4] sm:$0xf]
        %v357 = vld [vmem:[%s354 + $0x8] sm:$0x1]
        %v361 = vunpack.c.l.b16 %v355
        %v362 = vunpack.c.l.b16 %v356
        %v363 = vunpack.c.l.b16 %v357
        %v364 = vpack.c.b16 %v362, %v361
        %v365 = vpack.c.b16 %v363, %v363
        %vm367 = vcmask 146432
        %v369 = vsel %vm367, %v352, 0
        %v372 = vsel %vm367, %v353, 0
        %vm374 = vcmask 1040384
        %v376 = vsel %vm374, %v365, 0
        %378 = vmatpush.bf16.msra.mxu0 0
        %379 = vmatpush.bf16.msra.mxu0 0
        %380 = vmatpush.bf16.msra.mxu0 0
        %381 = vmatpush.bf16.msra.mxu0 0
        %382 = vmatpush.bf16.msra.mxu0 0
        %383 = vmatpush.bf16.msra.mxu0 0
        %384 = vmatpush.bf16.msra.mxu0 %v376
        %385 = vmatpush.bf16.msra.mxu0 %v364
        %386 = vmatmul.bf16.gmra.mxu0 %v369
        %v387 = vpop.f32.mrf.mxu0
        %v388 = vadd.f32 0.0, %v387
        %v389 = vpop.f32.mrf.mxu0
        %v390 = vadd.f32 0.0, %v389
        %391 = vmatmul.bf16.gmra.mxu0 %v372
        %v392 = vpop.f32.mrf.mxu0
        %v393 = vadd.f32 0.0, %v392
        %v394 = vpop.f32.mrf.mxu0
        %v395 = vadd.f32 0.0, %v394
        %396 = vdwg.mxu0
        %v400 = vunpack.c.l.b16 %v345
        %v401 = vunpack.c.l.b16 %v346
        %v402 = vunpack.c.l.b16 %v347
        %v403 = vpack.c.b16 %v401, %v400
        %v404 = vpack.c.b16 %v402, %v402
        %v407 = vsel %vm367, %v343, 0
        %v410 = vsel %vm367, %v344, 0
        %v413 = vsel %vm374, %v404, 0
        %415 = vmatpush.bf16.msra.mxu0 0
        %416 = vmatpush.bf16.msra.mxu0 0
        %417 = vmatpush.bf16.msra.mxu0 0
        %418 = vmatpush.bf16.msra.mxu0 0
        %419 = vmatpush.bf16.msra.mxu0 0
        %420 = vmatpush.bf16.msra.mxu0 0
        %421 = vmatpush.bf16.msra.mxu0 %v413
        %422 = vmatpush.bf16.msra.mxu0 %v403
        %423 = vmatmul.bf16.gmra.mxu0 %v407
        %v424 = vpop.f32.mrf.mxu0
        %v425 = vadd.f32 %v388, %v424
        %v426 = vpop.f32.mrf.mxu0
        %v427 = vadd.f32 %v390, %v426
        %428 = vmatmul.bf16.gmra.mxu0 %v410
        %v429 = vpop.f32.mrf.mxu0
        %v430 = vadd.f32 %v393, %v429
        %v431 = vpop.f32.mrf.mxu0
        %v432 = vadd.f32 %v395, %v431
        %433 = vdwg.mxu0
        %v434 = vld [vmem:[%s333 + $0x2] sm:$0xff]
        %v435 = vld [vmem:[%s333 + $0xa] sm:$0xff]
        %v436 = vld [vmem:[%s333 + $0x1a] sm:$0xff]
        %v437 = vld [vmem:[%s333 + $0x22] sm:$0xff]
        %v438 = vpack.c.bf16 %v435, %v434
        %v439 = vpack.c.bf16 %v437, %v436
        %s440 = scalar_lea.vmem %s1, 24
        %v441 = vld [vmem:[%s440] sm:$0xf]
        %v442 = vld [vmem:[%s440 + $0x4] sm:$0xf]
        %v443 = vld [vmem:[%s440 + $0x8] sm:$0x1]
        %v447 = vunpack.c.l.b16 %v441
        %v448 = vunpack.c.l.b16 %v442
        %v449 = vunpack.c.l.b16 %v443
        %v450 = vpack.c.b16 %v448, %v447
        %v451 = vpack.c.b16 %v449, %v449
        %v454 = vsel %vm367, %v438, 0
        %v457 = vsel %vm367, %v439, 0
        %v460 = vsel %vm374, %v451, 0
        %462 = vmatpush.bf16.msra.mxu0 0
        %463 = vmatpush.bf16.msra.mxu0 0
        %464 = vmatpush.bf16.msra.mxu0 0
        %465 = vmatpush.bf16.msra.mxu0 0
        %466 = vmatpush.bf16.msra.mxu0 0
        %467 = vmatpush.bf16.msra.mxu0 0
        %468 = vmatpush.bf16.msra.mxu0 %v460
        %469 = vmatpush.bf16.msra.mxu0 %v450
        %470 = vmatmul.bf16.gmra.mxu0 %v454
        %v471 = vpop.f32.mrf.mxu0
        %v472 = vadd.f32 0.0, %v471
        %v473 = vpop.f32.mrf.mxu0
        %v474 = vadd.f32 0.0, %v473
        %475 = vmatmul.bf16.gmra.mxu0 %v457
        %v476 = vpop.f32.mrf.mxu0
        %v477 = vadd.f32 0.0, %v476
        %v478 = vpop.f32.mrf.mxu0
        %v479 = vadd.f32 0.0, %v478
        %480 = vdwg.mxu0
        %v481 = vadd.f32 %v425, %v472
        %v482 = vadd.f32 %v427, %v474
        %v483 = vadd.f32 %v430, %v477
        %v484 = vadd.f32 %v432, %v479
        %v485 = vld [vmem:[#allocation4] sm:$0x1]
        %v487 = vperm.slane %v485, 0
        %v489 = vadd.f32 %v481, %v487
        %v490 = vadd.f32 %v482, %v487
        %v491 = vadd.f32 %v483, %v487
        %v492 = vadd.f32 %v484, %v487
        %v493 = vmax.f32 %v489, 0.0
        %v494 = vmax.f32 %v490, 0.0
        %v495 = vmax.f32 %v491, 0.0
        %v496 = vmax.f32 %v492, 0.0
        %497 = vst [vmem:[#allocation2] sm:$0xff] %v493
        %498 = vst [vmem:[#allocation2 + $0x8] sm:$0xff] %v494
        %499 = vst [vmem:[#allocation2 + $0x10] sm:$0xff] %v495
        %500 = vst [vmem:[#allocation2 + $0x18] sm:$0xff] %v496
        %v501 = vld [vmem:[#allocation2] ss:$2 sm:$0xff]
        %s502 = scalar_lea.vmem [#allocation2], 16
        %v503 = vld [vmem:[%s502] ss:$2 sm:$0xff]
        %s504 = scalar_lea.vmem [#allocation2], 1
        %v505 = vld [vmem:[%s504] ss:$2 sm:$0xff]
        %s506 = scalar_lea.vmem [#allocation2], 17
        %v507 = vld [vmem:[%s506] ss:$2 sm:$0xff]
        %v508 = vmax.f32 %v501, %v505
        %v509 = vmax.f32 %v503, %v507
        %512 = vrot.lane.b32.xlu0 %v508, 120
        %v513 = vpop.permute.xlu0 %512
        %514 = vrot.lane.b32.xlu0 %v509, 120
        %v515 = vpop.permute.xlu0 %514
        %v518 = vmax.f32 %v508, %v513
        %v519 = vmax.f32 %v509, %v515
        %520 = vst [vmem:[#allocation3] sm:$0x1] 0.0
        %521 = vst [vmem:[#allocation3 + $0x10] sm:$0x1] 0.0
        %522 = vst [vmem:[#allocation3 + $0x9] sm:$0x1] 0.0
        %523 = vst [vmem:[#allocation3 + $0x19] sm:$0x1] 0.0
        %524 = vst [vmem:[#allocation3 + $0x1] sm:$0xff] %v518
        %525 = vst [vmem:[#allocation3 + $0x11] sm:$0xff] %v519
        %v526 = vld [vmem:[#allocation3] sm:$0xff]
        %v527 = vld [vmem:[#allocation3 + $0x10] sm:$0xff]
        %v528 = vpack.c.bf16 %v527, %v526
        %v529 = vld [vmem:[#allocation6] sm:$0xf]
        %v530 = vld [vmem:[#allocation6 + $0x4] sm:$0xf]
        %v531 = vld [vmem:[#allocation6 + $0x8] sm:$0xf]
        %v532 = vld [vmem:[#allocation6 + $0xc] sm:$0xf]
        %v533 = vld [vmem:[#allocation6 + $0x10] sm:$0xf]
        %v534 = vld [vmem:[#allocation6 + $0x14] sm:$0xf]
        %v535 = vld [vmem:[#allocation6 + $0x18] sm:$0xf]
        %v536 = vld [vmem:[#allocation6 + $0x1c] sm:$0xf]
        %v537 = vld [vmem:[#allocation6 + $0x20] sm:$0xf]
        %v538 = vld [vmem:[#allocation6 + $0x24] sm:$0xf]
        %v539 = vld [vmem:[#allocation6 + $0x28] sm:$0xf]
        %v540 = vld [vmem:[#allocation6 + $0x2c] sm:$0xf]
        %v541 = vld [vmem:[#allocation6 + $0x30] sm:$0xf]
        %v542 = vld [vmem:[#allocation6 + $0x34] sm:$0xf]
        %v543 = vld [vmem:[#allocation6 + $0x38] sm:$0xf]
        %v544 = vld [vmem:[#allocation6 + $0x3c] sm:$0xf]
        %v545 = vld [vmem:[#allocation3 + $0x1] sm:$0xff]
        %v546 = vld [vmem:[#allocation3 + $0x11] sm:$0xff]
        %v547 = vpack.c.bf16 %v546, %v545
        %s548 = scalar_lea.vmem [#allocation6], 64
        %v549 = vld [vmem:[%s548] sm:$0xf]
        %v550 = vld [vmem:[%s548 + $0x4] sm:$0xf]
        %v551 = vld [vmem:[%s548 + $0x8] sm:$0xf]
        %v552 = vld [vmem:[%s548 + $0xc] sm:$0xf]
        %v553 = vld [vmem:[%s548 + $0x10] sm:$0xf]
        %v554 = vld [vmem:[%s548 + $0x14] sm:$0xf]
        %v555 = vld [vmem:[%s548 + $0x18] sm:$0xf]
        %v556 = vld [vmem:[%s548 + $0x1c] sm:$0xf]
        %v557 = vld [vmem:[%s548 + $0x20] sm:$0xf]
        %v558 = vld [vmem:[%s548 + $0x24] sm:$0xf]
        %v559 = vld [vmem:[%s548 + $0x28] sm:$0xf]
        %v560 = vld [vmem:[%s548 + $0x2c] sm:$0xf]
        %v561 = vld [vmem:[%s548 + $0x30] sm:$0xf]
        %v562 = vld [vmem:[%s548 + $0x34] sm:$0xf]
        %v563 = vld [vmem:[%s548 + $0x38] sm:$0xf]
        %v564 = vld [vmem:[%s548 + $0x3c] sm:$0xf]
        %v581 = vunpack.c.l.b16 %v549
        %v582 = vunpack.c.l.b16 %v550
        %v583 = vunpack.c.l.b16 %v551
        %v584 = vunpack.c.l.b16 %v552
        %v585 = vunpack.c.l.b16 %v553
        %v586 = vunpack.c.l.b16 %v554
        %v587 = vunpack.c.l.b16 %v555
        %v588 = vunpack.c.l.b16 %v556
        %v589 = vunpack.c.l.b16 %v557
        %v590 = vunpack.c.l.b16 %v558
        %v591 = vunpack.c.l.b16 %v559
        %v592 = vunpack.c.l.b16 %v560
        %v593 = vunpack.c.l.b16 %v561
        %v594 = vunpack.c.l.b16 %v562
        %v595 = vunpack.c.l.b16 %v563
        %v596 = vunpack.c.l.b16 %v564
        %v597 = vpack.c.b16 %v582, %v581
        %v598 = vpack.c.b16 %v584, %v583
        %v599 = vpack.c.b16 %v586, %v585
        %v600 = vpack.c.b16 %v588, %v587
        %v601 = vpack.c.b16 %v590, %v589
        %v602 = vpack.c.b16 %v592, %v591
        %v603 = vpack.c.b16 %v594, %v593
        %v604 = vpack.c.b16 %v596, %v595
        %613 = vmatpush.bf16.msra.mxu0 %v604
        %614 = vmatpush.bf16.msra.mxu0 %v603
        %615 = vmatpush.bf16.msra.mxu0 %v602
        %616 = vmatpush.bf16.msra.mxu0 %v601
        %617 = vmatpush.bf16.msra.mxu0 %v600
        %618 = vmatpush.bf16.msra.mxu0 %v599
        %619 = vmatpush.bf16.msra.mxu0 %v598
        %620 = vmatpush.bf16.msra.mxu0 %v597
        %621 = vmatmul.bf16.gmra.mxu0 %v547
        %v622 = vpop.f32.mrf.mxu0
        %v623 = vadd.f32 0.0, %v622
        %v624 = vpop.f32.mrf.mxu0
        %v625 = vadd.f32 0.0, %v624
        %626 = vdwg.mxu0
        %v643 = vunpack.c.l.b16 %v529
        %v644 = vunpack.c.l.b16 %v530
        %v645 = vunpack.c.l.b16 %v531
        %v646 = vunpack.c.l.b16 %v532
        %v647 = vunpack.c.l.b16 %v533
        %v648 = vunpack.c.l.b16 %v534
        %v649 = vunpack.c.l.b16 %v535
        %v650 = vunpack.c.l.b16 %v536
        %v651 = vunpack.c.l.b16 %v537
        %v652 = vunpack.c.l.b16 %v538
        %v653 = vunpack.c.l.b16 %v539
        %v654 = vunpack.c.l.b16 %v540
        %v655 = vunpack.c.l.b16 %v541
        %v656 = vunpack.c.l.b16 %v542
        %v657 = vunpack.c.l.b16 %v543
        %v658 = vunpack.c.l.b16 %v544
        %v659 = vpack.c.b16 %v644, %v643
        %v660 = vpack.c.b16 %v646, %v645
        %v661 = vpack.c.b16 %v648, %v647
        %v662 = vpack.c.b16 %v650, %v649
        %v663 = vpack.c.b16 %v652, %v651
        %v664 = vpack.c.b16 %v654, %v653
        %v665 = vpack.c.b16 %v656, %v655
        %v666 = vpack.c.b16 %v658, %v657
        %675 = vmatpush.bf16.msra.mxu0 %v666
        %676 = vmatpush.bf16.msra.mxu0 %v665
        %677 = vmatpush.bf16.msra.mxu0 %v664
        %678 = vmatpush.bf16.msra.mxu0 %v663
        %679 = vmatpush.bf16.msra.mxu0 %v662
        %680 = vmatpush.bf16.msra.mxu0 %v661
        %681 = vmatpush.bf16.msra.mxu0 %v660
        %682 = vmatpush.bf16.msra.mxu0 %v659
        %683 = vmatmul.bf16.gmra.mxu0 %v528
        %v684 = vpop.f32.mrf.mxu0
        %v685 = vadd.f32 %v623, %v684
        %v686 = vpop.f32.mrf.mxu0
        %v687 = vadd.f32 %v625, %v686
        %688 = vdwg.mxu0
        %v689 = vld [vmem:[#allocation3 + $0x2] sm:$0xff]
        %v690 = vld [vmem:[#allocation3 + $0x12] sm:$0xff]
        %v691 = vpack.c.bf16 %v690, %v689
        %s692 = scalar_lea.vmem [#allocation6], 128
        %v693 = vld [vmem:[%s692] sm:$0xf]
        %v694 = vld [vmem:[%s692 + $0x4] sm:$0xf]
        %v695 = vld [vmem:[%s692 + $0x8] sm:$0xf]
        %v696 = vld [vmem:[%s692 + $0xc] sm:$0xf]
        %v697 = vld [vmem:[%s692 + $0x10] sm:$0xf]
        %v698 = vld [vmem:[%s692 + $0x14] sm:$0xf]
        %v699 = vld [vmem:[%s692 + $0x18] sm:$0xf]
        %v700 = vld [vmem:[%s692 + $0x1c] sm:$0xf]
        %v701 = vld [vmem:[%s692 + $0x20] sm:$0xf]
        %v702 = vld [vmem:[%s692 + $0x24] sm:$0xf]
        %v703 = vld [vmem:[%s692 + $0x28] sm:$0xf]
        %v704 = vld [vmem:[%s692 + $0x2c] sm:$0xf]
        %v705 = vld [vmem:[%s692 + $0x30] sm:$0xf]
        %v706 = vld [vmem:[%s692 + $0x34] sm:$0xf]
        %v707 = vld [vmem:[%s692 + $0x38] sm:$0xf]
        %v708 = vld [vmem:[%s692 + $0x3c] sm:$0xf]
        %v725 = vunpack.c.l.b16 %v693
        %v726 = vunpack.c.l.b16 %v694
        %v727 = vunpack.c.l.b16 %v695
        %v728 = vunpack.c.l.b16 %v696
        %v729 = vunpack.c.l.b16 %v697
        %v730 = vunpack.c.l.b16 %v698
        %v731 = vunpack.c.l.b16 %v699
        %v732 = vunpack.c.l.b16 %v700
        %v733 = vunpack.c.l.b16 %v701
        %v734 = vunpack.c.l.b16 %v702
        %v735 = vunpack.c.l.b16 %v703
        %v736 = vunpack.c.l.b16 %v704
        %v737 = vunpack.c.l.b16 %v705
        %v738 = vunpack.c.l.b16 %v706
        %v739 = vunpack.c.l.b16 %v707
        %v740 = vunpack.c.l.b16 %v708
        %v741 = vpack.c.b16 %v726, %v725
        %v742 = vpack.c.b16 %v728, %v727
        %v743 = vpack.c.b16 %v730, %v729
        %v744 = vpack.c.b16 %v732, %v731
        %v745 = vpack.c.b16 %v734, %v733
        %v746 = vpack.c.b16 %v736, %v735
        %v747 = vpack.c.b16 %v738, %v737
        %v748 = vpack.c.b16 %v740, %v739
        %757 = vmatpush.bf16.msra.mxu0 %v748
        %758 = vmatpush.bf16.msra.mxu0 %v747
        %759 = vmatpush.bf16.msra.mxu0 %v746
        %760 = vmatpush.bf16.msra.mxu0 %v745
        %761 = vmatpush.bf16.msra.mxu0 %v744
        %762 = vmatpush.bf16.msra.mxu0 %v743
        %763 = vmatpush.bf16.msra.mxu0 %v742
        %764 = vmatpush.bf16.msra.mxu0 %v741
        %765 = vmatmul.bf16.gmra.mxu0 %v691
        %v766 = vpop.f32.mrf.mxu0
        %v767 = vadd.f32 0.0, %v766
        %v768 = vpop.f32.mrf.mxu0
        %v769 = vadd.f32 0.0, %v768
        %770 = vdwg.mxu0
        %v771 = vadd.f32 %v685, %v767
        %v772 = vadd.f32 %v687, %v769
        %v773 = vld [vmem:[#allocation8] sm:$0x1]
        %v775 = vperm.slane %v773, 0
        %v777 = vadd.f32 %v771, %v775
        %v778 = vadd.f32 %v772, %v775
        %v779 = vmax.f32 %v777, 0.0
        %v780 = vmax.f32 %v778, 0.0
        %v781 = vrot.slane %v779, 4
        %v782 = vadd.f32 %v779, %v781
        %v783 = vrot.slane %v782, 2
        %v784 = vadd.f32 %v782, %v783
        %v785 = vrot.slane %v784, 1
        %v786 = vadd.f32 %v784, %v785
        %v787 = vrot.slane %v780, 4
        %v788 = vadd.f32 %v780, %v787
        %v789 = vrot.slane %v788, 2
        %v790 = vadd.f32 %v788, %v789
        %v791 = vrot.slane %v790, 1
        %v792 = vadd.f32 %v790, %v791
        %v793 = vld [vmem:[%s5] sm:$0xff]
        %v794 = vld [vmem:[%s5 + $0x8] sm:$0xff]
        %v795 = vld [vmem:[%s5 + $0x10] sm:$0xff]
        %v796 = vld [vmem:[%s5 + $0x18] sm:$0xff]
        %v797 = vld [vmem:[%s5 + $0x20] sm:$0xff]
        %v798 = vld [vmem:[%s5 + $0x28] sm:$0xff]
        %v799 = vld [vmem:[%s5 + $0x30] sm:$0xff]
        %v800 = vld [vmem:[%s5 + $0x38] sm:$0xff]
        %v801 = vld [vmem:[%s5 + $0x40] sm:$0xff]
        %v802 = vld [vmem:[%s5 + $0x48] sm:$0xff]
        %v803 = vld [vmem:[%s5 + $0x50] sm:$0xff]
        %v804 = vld [vmem:[%s5 + $0x58] sm:$0xff]
        %v805 = vld [vmem:[%s5 + $0x60] sm:$0xff]
        %v806 = vld [vmem:[%s5 + $0x68] sm:$0xff]
        %v807 = vld [vmem:[%s5 + $0x70] sm:$0xff]
        %v808 = vld [vmem:[%s5 + $0x78] sm:$0xff]
        %v809 = vld [vmem:[#allocation9] sm:$0x1]
        %v811 = vperm.slane %v809, 0
        %vm815 = vcmask 1041409
        %v816 = vsel %vm815, %v792, %v786
        %818 = vmatpush.msra.mxu0 %v808
        %819 = vmatpush.msra.mxu0 %v807
        %820 = vmatpush.msra.mxu0 %v806
        %821 = vmatpush.msra.mxu0 %v805
        %822 = vmatpush.msra.mxu0 %v804
        %823 = vmatpush.msra.mxu0 %v803
        %824 = vmatpush.msra.mxu0 %v802
        %825 = vmatpush.msra.mxu0 %v801
        %826 = vmatpush.msra.mxu0 %v800
        %827 = vmatpush.msra.mxu0 %v799
        %828 = vmatpush.msra.mxu0 %v798
        %829 = vmatpush.msra.mxu0 %v797
        %830 = vmatpush.msra.mxu0 %v796
        %831 = vmatpush.msra.mxu0 %v795
        %832 = vmatpush.msra.mxu0 %v794
        %833 = vmatpush.msra.mxu0 %v793
        %834 = vmatmul.f32.gmra.mxu0 %v816
        %v835 = vpop.f32.mrf.mxu0
        %v836 = vadd.f32 %v811, %v835
        %837 = vdwg.mxu0
        %v838 = vlaneseq
        %v839 = vand.u32 %v838, 127
        %vm840 = vcmp.lt.s32.totalorder %v839, 4
        %v841 = vsel %vm840, %v836, -3.4028235e+38
        %vm842 = vcmask 1041408
        %v843 = vsel %vm842, %v841, -inf
        %844 = vmax.xlane.f32.xlu0 %v843
        %v845 = vpop.xlane.xlu0 %844
        %v846 = vsub.f32 %v836, %v845
        %v847 = vmul.f32 %v846, 1.442695
        %v848 = vpow.pop %v847
        %v849 = vsel %vm840, %v848, 0.0
        %v850 = vsel %vm842, %v849, 0.0
        %851 = vadd.xlane.f32.xlu0 %v850
        %v852 = vpop.xlane.xlu0 %851
        %v853 = vrcp.pop %v852
        %v854 = vmul.f32 %v852, %v853
        %v855 = vsub.f32 1.0, %v854
        %v856 = vmul.f32 %v853, %v855
        %v857 = vadd.f32 %v853, %v856
        %vm858 = vweird.f32 %v852
        %vm859 = vweird.f32 %v853
        %vm860 = vmor %vm858, %vm859
        %v861 = vsel %vm860, %v853, %v857
        %v862 = vand.u32 2147483647, %v852
        %vm863 = vcmp.eq.f32.partialorder %v862, 8.507059e+37
        %v864 = vand.u32 %v852, 2147483648
        %v865 = vor.u32 1.1754944e-38, %v864
        %v866 = vsel %vm863, %v865, %v861
        %v867 = vmul.f32 %v849, %v866
        %v869 = vrot.slane %v867, 1
        %v871 = vsub.f32 %v867, %v869
        %v872 = vmul.f32 %v871, %v871
        %v873 = vperm.slane %v872, 0
        %874 = vst [vmem:[%s337] sm:$0xff] %v873
        %p875 = scmp.lt.s32.totalorder %s21, 1
        %s876 = scalar_select %p875, %s21, 1
        %s877 = smul.addr %s876, 8
        %s878 = scalar_lea.vmem %s7, %s877
        // Predicated region
        $region65: #{forward.1} parent=47 // pred_check
          %p879 = pneg %p191
        $region66: #{forward.1} parent=47 // pred_check_branch
          %881 = sbr.rel (%p879) target = $region68
        $region67: #{forward.1} parent=47 // pred_region
          _
        $region68: #{forward.1} parent=47 // pred_fallthru
          _
      $region48: #{forward.1} parent=5 // pred_fallthru
        _
      %p882 = scmp.le.s32.totalorder 2, %s16
      // Predicated region
      $region69: #{forward.1} parent=5 // pred_check
        %p883 = pneg %p882
      $region70: #{forward.1} parent=5 // pred_check_branch
        %885 = sbr.rel (%p883) target = $region72
      $region71: #{forward.1} parent=5 // pred_region
        %s886 = ssub.s32 %s16, 2
        // Predicated region
        $region73: #{forward.1} parent=71 // pred_check
          %p887 = pneg %p197
        $region74: #{forward.1} parent=71 // pred_check_branch
          %889 = sbr.rel (%p887) target = $region76
        $region75: #{forward.1} parent=71 // pred_region
          %p890 = scmp.lt.s32.totalorder %s22, 1
          %s891 = scalar_select %p890, %s22, 1
          %s892 = smul.addr %s891, 8
          %s893 = scalar_lea.vmem %s7, %s892
        $region76: #{forward.1} parent=71 // pred_fallthru
          _
      $region72: #{forward.1} parent=5 // pred_fallthru
        _
    $region6: #{forward.1} parent=1 // loop_footer
      %s20 = sadd.s32 1, %s16
    $region7: #{forward.1} parent=1 // loop_footer_branch
      %15 = sbr.rel target = $region3
    $region8: #{forward.1} parent=1 // loop_exit
      _
    %894 = vsyncpa [#allocation5], 1
    %s895 = scalar_lea.sflag [#allocation5], 1
    %896 = vsyncpa %s895, 1
    %897 = vsyncpa [#allocation7], 1
    %898 = vsyncpa [#allocation10], 1

</llo_original>
